<compile_context>
chip_gen: v7x
topology: tpu7x:2x2x1
jax: 0.10.0
libtpu: 0.0.40
codegen_flags: <defaults>
</compile_context>

<pallas_src>
import math
import functools

import jax
import jax.numpy as jnp
from jax.experimental import pallas as pl
from jax.experimental.pallas import tpu as pltpu


def _round_up(n, m):
    return ((n + m - 1) // m) * m


def fte_kernel(x_ref, vec_ref, we1_ref, we2_ref, w1a_ref, w1b_ref, b1_ref,
               w2ab_ref, w2c_ref, b2ab_ref, b2c_ref,
               dx_ref, dvec_ref, *, hidden_channels):
    H = hidden_channels
    tn = x_ref.shape[0]
    inv_sqrt_2 = 1.0 / math.sqrt(2.0)
    inv_sqrt_h = 1.0 / math.sqrt(H)
    mxu_dtype = x_ref.dtype            # matmul-operand dtype (f32 or bf16)

    x = x_ref[...]                     # (tn, H)

    # Spatial-major vec block (3, tn, H): fuse the 3 equi_proj matmuls into one
    # (3*tn, H) x (H, H) dot per output half. Leading-dim reshape is layout-free
    # because tn is a multiple of 8 (sublane-aligned).
    vec_flat = vec_ref[...].reshape(3 * tn, H)
    v1 = jnp.dot(vec_flat, we1_ref[...],
                 preferred_element_type=jnp.float32).reshape(3, tn, H)
    v2 = jnp.dot(vec_flat, we2_ref[...],
                 preferred_element_type=jnp.float32).reshape(3, tn, H)

    # NOTE: the reference forward computes a "scalrization" tensor from node_frame
    # that never feeds any output (dead code); it is intentionally omitted, so
    # node_frame never enters the kernel.

    scalar = jnp.sqrt(jnp.sum(v1 * v1, axis=0))                 # (tn, H) = ||vec1||
    vec_dot = jnp.sum(v1 * v2, axis=0) * inv_sqrt_h             # (tn, H)

    # xequi_proj[0]: concat([x, scalar]) @ W1  ==  x @ W1[:H] + scalar @ W1[H:]
    # (no lane-axis concatenate, no VMEM copy)
    h = (jnp.dot(x, w1a_ref[...], preferred_element_type=jnp.float32)
         + jnp.dot(scalar.astype(mxu_dtype), w1b_ref[...],
                   preferred_element_type=jnp.float32)
         + b1_ref[...])
    h = h * jax.nn.sigmoid(h)                                   # SiLU in f32 (VPU+EUP)

    # xequi_proj[2]: dx only needs xvec1 + xvec2, so those two column blocks of
    # W2 are pre-summed in the wrapper (w2ab) -> 2 matmuls instead of 3.
    hm = h.astype(mxu_dtype)
    xvec12 = jnp.dot(hm, w2ab_ref[...], preferred_element_type=jnp.float32) + b2ab_ref[...]
    xvec3 = jnp.dot(hm, w2c_ref[...], preferred_element_type=jnp.float32) + b2c_ref[...]

    dx_ref[...] = (xvec12 + vec_dot) * inv_sqrt_2
    dvec_ref[...] = xvec3[None, :, :] * v2                      # (3, tn, H) dense store


def fte_forward(x, vec, node_frame, params, *, tile_n=256, mxu_dtype=jnp.float32):
    """FTE forward. vec is (N, 3, H) like the PyTorch module; node_frame is unused."""
    del node_frame  # only feeds dead scalrization code in the reference forward
    N, H = x.shape
    we, w1, b1, w2, b2 = params

    # Effective tile: big enough to fill the MXU M-dim, no bigger than the
    # (8-aligned) node count. Pad N so the grid divides exactly (zero rows are
    # harmless and sliced off afterwards).
    tn = min(tile_n, _round_up(N, 8))
    Np = _round_up(N, tn)

    x_c = x.astype(mxu_dtype)
    vec_sm = jnp.transpose(vec, (1, 0, 2)).astype(mxu_dtype)    # (3, N, H) spatial-major
    if Np == N:
        x_p, vec_p = x_c, vec_sm
    else:
        x_p = jnp.zeros((Np, H), mxu_dtype).at[:N].set(x_c)
        vec_p = jnp.zeros((3, Np, H), mxu_dtype).at[:, :N].set(vec_sm)

    # Pre-split weights so every in-kernel result stays lane-aligned even when
    # H is not a multiple of 128. Pre-sum the two dx column blocks of W2/b2.
    we1, we2 = we[:, :H], we[:, H:]
    w1a, w1b = w1[:H, :], w1[H:, :]
    w2ab = w2[:, :H] + w2[:, H:2 * H]
    w2c = w2[:, 2 * H:]
    b2ab = b2[:, :H] + b2[:, H:2 * H]
    b2c = b2[:, 2 * H:]
    wcast = lambda w: w.astype(mxu_dtype)

    def weight_spec(shape):
        # constant-index blocks: DMA'd once, held resident across the grid
        return pl.BlockSpec(shape, lambda i: (0, 0))

    kernel = functools.partial(fte_kernel, hidden_channels=H)
    dx_p, dvec_p = pl.pallas_call(
        kernel,
        out_shape=(jax.ShapeDtypeStruct((Np, H), jnp.float32),
                   jax.ShapeDtypeStruct((3, Np, H), jnp.float32)),
        grid_spec=pltpu.PrefetchScalarGridSpec(
            num_scalar_prefetch=0,
            grid=(Np // tn,),
            in_specs=[
                pl.BlockSpec((tn, H), lambda i: (i, 0)),          # x
                pl.BlockSpec((3, tn, H), lambda i: (0, i, 0)),    # vec (spatial-major)
                weight_spec((H, H)),                              # we[:, :H]
                weight_spec((H, H)),                              # we[:, H:]
                weight_spec((H, H)),                              # w1[:H, :]
                weight_spec((H, H)),                              # w1[H:, :]
                weight_spec((1, H)),                              # b1
                weight_spec((H, H)),                              # w2[:, :H] + w2[:, H:2H]
                weight_spec((H, H)),                              # w2[:, 2H:]
                weight_spec((1, H)),                              # b2ab
                weight_spec((1, H)),                              # b2c
            ],
            out_specs=[
                pl.BlockSpec((tn, H), lambda i: (i, 0)),          # dx
                pl.BlockSpec((3, tn, H), lambda i: (0, i, 0)),    # dvec (spatial-major)
            ],
        ),
        compiler_params=pltpu.CompilerParams(dimension_semantics=("parallel",)),
    )(x_p, vec_p,
      wcast(we1), wcast(we2), wcast(w1a), wcast(w1b), b1,
      wcast(w2ab), wcast(w2c), b2ab, b2c)

    dx = dx_p[:N]
    dvec = jnp.transpose(dvec_p, (1, 0, 2))[:N]                  # back to (N, 3, H)
    return dx, dvec


def xavier_uniform(key, fan_in, fan_out):
    bound = math.sqrt(6.0 / (fan_in + fan_out))
    return jax.random.uniform(key, (fan_in, fan_out), jnp.float32, -bound, bound)


def fte_reference(x, vec, node_frame, params, H):
    """Pure-JAX f32 reference mirroring the PyTorch forward."""
    we, w1, b1, w2, b2 = params
    inv_sqrt_2 = 1.0 / math.sqrt(2.0)
    inv_sqrt_h = 1.0 / math.sqrt(H)
    vecp = jnp.einsum('nih,hk->nik', vec, we)
    vec1, vec2 = vecp[..., :H], vecp[..., H:]
    # scalrization (uses node_frame) is dead code in the reference module
    scalar = jnp.sqrt(jnp.sum(vec1 * vec1, axis=1))
    vec_dot = jnp.sum(vec1 * vec2, axis=1) * inv_sqrt_h
    xs = jnp.concatenate([x, scalar], axis=-1)
    h = xs @ w1 + b1[0]
    h = h * jax.nn.sigmoid(h)
    xv = h @ w2 + b2[0]
    xvec1, xvec2, xvec3 = xv[:, :H], xv[:, H:2 * H], xv[:, 2 * H:]
    dx = (xvec1 + xvec2 + vec_dot) * inv_sqrt_2
    dvec = xvec3[:, None, :] * vec2
    return dx, dvec


if __name__ == "__main__":
    N, H = 16, 32  # small synthetic shapes: 16 nodes, hidden_channels=32

    key = jax.random.PRNGKey(0)
    k_x, k_vec, k_frame, k_we, k_w1, k_w2 = jax.random.split(key, 6)

    x = jax.random.normal(k_x, (N, H), jnp.float32)
    vec = jax.random.normal(k_vec, (N, 3, H), jnp.float32)
    node_frame = jax.random.normal(k_frame, (N, 3, 3), jnp.float32)

    # Deterministic parameter init matching the module's reset_parameters
    # (xavier_uniform weights, zero biases), stored as (in, out).
    we = xavier_uniform(k_we, H, 2 * H)           # equi_proj (no bias)
    w1 = xavier_uniform(k_w1, 2 * H, H)           # xequi_proj[0]
    b1 = jnp.zeros((1, H), jnp.float32)
    w2 = xavier_uniform(k_w2, H, 3 * H)           # xequi_proj[2]
    b2 = jnp.zeros((1, 3 * H), jnp.float32)
    params = (we, w1, b1, w2, b2)

    dx_ref, dvec_ref = fte_reference(x, vec, node_frame, params, H)

    # f32 MXU operands: near-bitwise-faithful path, tight tolerance.
    dx, dvec = fte_forward(x, vec, node_frame, params, tile_n=256)
    jax.block_until_ready((dx, dvec))
    assert dx.shape == (N, H) and dvec.shape == (N, 3, H)
    assert jnp.allclose(dx, dx_ref, atol=3e-5, rtol=3e-5)
    assert jnp.allclose(dvec, dvec_ref, atol=3e-5, rtol=3e-5)

    # bf16 MXU operands (recommended on v6e/v7x): f32 accumulate + f32 elementwise,
    # so only GEMM-input rounding error remains -> loose tolerance check.
    dx_bf, dvec_bf = fte_forward(x, vec, node_frame, params,
                                 tile_n=256, mxu_dtype=jnp.bfloat16)
    jax.block_until_ready((dx_bf, dvec_bf))
    assert jnp.allclose(dx_bf, dx_ref, atol=2e-1, rtol=1e-1)
    assert jnp.allclose(dvec_bf, dvec_ref, atol=2e-1, rtol=1e-1)

    print("KERNEL_OK")
</pallas_src>

<mosaic_0001>
module attributes {stable_mosaic.version = 11 : i64} {
  func.func @fte_kernel(%arg0: i32, %arg1: memref<16x32xf32, #tpu.memory_space<vmem>>, %arg2: memref<3x16x32xf32, #tpu.memory_space<vmem>>, %arg3: memref<32x32xf32, #tpu.memory_space<vmem>>, %arg4: memref<32x32xf32, #tpu.memory_space<vmem>>, %arg5: memref<32x32xf32, #tpu.memory_space<vmem>>, %arg6: memref<32x32xf32, #tpu.memory_space<vmem>>, %arg7: memref<1x32xf32, #tpu.memory_space<vmem>>, %arg8: memref<32x32xf32, #tpu.memory_space<vmem>>, %arg9: memref<32x32xf32, #tpu.memory_space<vmem>>, %arg10: memref<1x32xf32, #tpu.memory_space<vmem>>, %arg11: memref<1x32xf32, #tpu.memory_space<vmem>>, %arg12: memref<16x32xf32, #tpu.memory_space<vmem>>, %arg13: memref<3x16x32xf32, #tpu.memory_space<vmem>>) attributes {dimension_semantics = [#tpu.dimension_semantics<parallel>], iteration_bounds = array<i64: 1>, scalar_prefetch = 0 : i64, scratch_operands = 0 : i64, tpu.core_type = #tpu.core_type<tc>, window_params = [{transform_indices = @transform_0, window_bounds = array<i64: 16, 32>}, {transform_indices = @transform_1, window_bounds = array<i64: 3, 16, 32>}, {pipeline_mode = #tpu.pipeline_mode<synchronous>, transform_indices = @transform_2, window_bounds = array<i64: 32, 32>}, {pipeline_mode = #tpu.pipeline_mode<synchronous>, transform_indices = @transform_3, window_bounds = array<i64: 32, 32>}, {pipeline_mode = #tpu.pipeline_mode<synchronous>, transform_indices = @transform_4, window_bounds = array<i64: 32, 32>}, {pipeline_mode = #tpu.pipeline_mode<synchronous>, transform_indices = @transform_5, window_bounds = array<i64: 32, 32>}, {pipeline_mode = #tpu.pipeline_mode<synchronous>, transform_indices = @transform_6, window_bounds = array<i64: 1, 32>}, {pipeline_mode = #tpu.pipeline_mode<synchronous>, transform_indices = @transform_7, window_bounds = array<i64: 32, 32>}, {pipeline_mode = #tpu.pipeline_mode<synchronous>, transform_indices = @transform_8, window_bounds = array<i64: 32, 32>}, {pipeline_mode = #tpu.pipeline_mode<synchronous>, transform_indices = @transform_9, window_bounds = array<i64: 1, 32>}, {pipeline_mode = #tpu.pipeline_mode<synchronous>, transform_indices = @transform_10, window_bounds = array<i64: 1, 32>}, {transform_indices = @transform_11, window_bounds = array<i64: 16, 32>}, {transform_indices = @transform_12, window_bounds = array<i64: 3, 16, 32>}]} {
    %c0 = arith.constant 0 : index
    %c0_0 = arith.constant 0 : index
    %0 = vector.load %arg1[%c0, %c0_0] : memref<16x32xf32, #tpu.memory_space<vmem>>, vector<16x32xf32>
    %c0_1 = arith.constant 0 : index
    %c0_2 = arith.constant 0 : index
    %c0_3 = arith.constant 0 : index
    %1 = vector.load %arg2[%c0_1, %c0_2, %c0_3] : memref<3x16x32xf32, #tpu.memory_space<vmem>>, vector<3x16x32xf32>
    %2 = vector.shape_cast %1 : vector<3x16x32xf32> to vector<48x32xf32>
    %c0_4 = arith.constant 0 : index
    %c0_5 = arith.constant 0 : index
    %3 = vector.load %arg3[%c0_4, %c0_5] : memref<32x32xf32, #tpu.memory_space<vmem>>, vector<32x32xf32>
    %cst = arith.constant dense<0.000000e+00> : vector<48x32xf32>
    %4 = tpu.matmul %2, %3, %cst {dimension_numbers = #tpu.dot_dimension_numbers<[1], [0], [0], [1], [0, 0, 1, 1], [], []>} : vector<48x32xf32>, vector<32x32xf32>, vector<48x32xf32> -> vector<48x32xf32>
    %5 = vector.shape_cast %4 : vector<48x32xf32> to vector<3x16x32xf32>
    %c0_6 = arith.constant 0 : index
    %c0_7 = arith.constant 0 : index
    %6 = vector.load %arg4[%c0_6, %c0_7] : memref<32x32xf32, #tpu.memory_space<vmem>>, vector<32x32xf32>
    %cst_8 = arith.constant dense<0.000000e+00> : vector<48x32xf32>
    %7 = tpu.matmul %2, %6, %cst_8 {dimension_numbers = #tpu.dot_dimension_numbers<[1], [0], [0], [1], [0, 0, 1, 1], [], []>} : vector<48x32xf32>, vector<32x32xf32>, vector<48x32xf32> -> vector<48x32xf32>
    %8 = vector.shape_cast %7 : vector<48x32xf32> to vector<3x16x32xf32>
    %9 = arith.mulf %5, %5 : vector<3x16x32xf32>
    %cst_9 = arith.constant dense<0.000000e+00> : vector<16x32xf32>
    %10 = vector.multi_reduction <add>, %9, %cst_9 [0] : vector<3x16x32xf32> to vector<16x32xf32>
    %11 = math.sqrt %10 : vector<16x32xf32>
    %12 = arith.mulf %5, %8 : vector<3x16x32xf32>
    %cst_10 = arith.constant dense<0.000000e+00> : vector<16x32xf32>
    %13 = vector.multi_reduction <add>, %12, %cst_10 [0] : vector<3x16x32xf32> to vector<16x32xf32>
    %cst_11 = arith.constant 0.176776692 : f32
    %14 = vector.broadcast %cst_11 : f32 to vector<16x32xf32>
    %15 = arith.mulf %13, %14 : vector<16x32xf32>
    %c0_12 = arith.constant 0 : index
    %c0_13 = arith.constant 0 : index
    %16 = vector.load %arg5[%c0_12, %c0_13] : memref<32x32xf32, #tpu.memory_space<vmem>>, vector<32x32xf32>
    %cst_14 = arith.constant dense<0.000000e+00> : vector<16x32xf32>
    %17 = tpu.matmul %0, %16, %cst_14 {dimension_numbers = #tpu.dot_dimension_numbers<[1], [0], [0], [1], [0, 0, 1, 1], [], []>} : vector<16x32xf32>, vector<32x32xf32>, vector<16x32xf32> -> vector<16x32xf32>
    %c0_15 = arith.constant 0 : index
    %c0_16 = arith.constant 0 : index
    %18 = vector.load %arg6[%c0_15, %c0_16] : memref<32x32xf32, #tpu.memory_space<vmem>>, vector<32x32xf32>
    %cst_17 = arith.constant dense<0.000000e+00> : vector<16x32xf32>
    %19 = tpu.matmul %11, %18, %cst_17 {dimension_numbers = #tpu.dot_dimension_numbers<[1], [0], [0], [1], [0, 0, 1, 1], [], []>} : vector<16x32xf32>, vector<32x32xf32>, vector<16x32xf32> -> vector<16x32xf32>
    %20 = arith.addf %17, %19 : vector<16x32xf32>
    %c0_18 = arith.constant 0 : index
    %c0_19 = arith.constant 0 : index
    %21 = vector.load %arg7[%c0_18, %c0_19] : memref<1x32xf32, #tpu.memory_space<vmem>>, vector<1x32xf32>
    %22 = vector.broadcast %21 : vector<1x32xf32> to vector<16x32xf32>
    %23 = arith.addf %20, %22 : vector<16x32xf32>
    %24 = arith.negf %23 : vector<16x32xf32>
    %25 = math.exp %24 : vector<16x32xf32>
    %cst_20 = arith.constant 1.000000e+00 : f32
    %26 = vector.broadcast %cst_20 : f32 to vector<16x32xf32>
    %27 = arith.addf %26, %25 : vector<16x32xf32>
    %28 = arith.divf %26, %27 : vector<16x32xf32>
    %29 = arith.mulf %23, %28 : vector<16x32xf32>
    %c0_21 = arith.constant 0 : index
    %c0_22 = arith.constant 0 : index
    %30 = vector.load %arg8[%c0_21, %c0_22] : memref<32x32xf32, #tpu.memory_space<vmem>>, vector<32x32xf32>
    %cst_23 = arith.constant dense<0.000000e+00> : vector<16x32xf32>
    %31 = tpu.matmul %29, %30, %cst_23 {dimension_numbers = #tpu.dot_dimension_numbers<[1], [0], [0], [1], [0, 0, 1, 1], [], []>} : vector<16x32xf32>, vector<32x32xf32>, vector<16x32xf32> -> vector<16x32xf32>
    %c0_24 = arith.constant 0 : index
    %c0_25 = arith.constant 0 : index
    %32 = vector.load %arg10[%c0_24, %c0_25] : memref<1x32xf32, #tpu.memory_space<vmem>>, vector<1x32xf32>
    %33 = vector.broadcast %32 : vector<1x32xf32> to vector<16x32xf32>
    %34 = arith.addf %31, %33 : vector<16x32xf32>
    %c0_26 = arith.constant 0 : index
    %c0_27 = arith.constant 0 : index
    %35 = vector.load %arg9[%c0_26, %c0_27] : memref<32x32xf32, #tpu.memory_space<vmem>>, vector<32x32xf32>
    %cst_28 = arith.constant dense<0.000000e+00> : vector<16x32xf32>
    %36 = tpu.matmul %29, %35, %cst_28 {dimension_numbers = #tpu.dot_dimension_numbers<[1], [0], [0], [1], [0, 0, 1, 1], [], []>} : vector<16x32xf32>, vector<32x32xf32>, vector<16x32xf32> -> vector<16x32xf32>
    %c0_29 = arith.constant 0 : index
    %c0_30 = arith.constant 0 : index
    %37 = vector.load %arg11[%c0_29, %c0_30] : memref<1x32xf32, #tpu.memory_space<vmem>>, vector<1x32xf32>
    %38 = vector.broadcast %37 : vector<1x32xf32> to vector<16x32xf32>
    %39 = arith.addf %36, %38 : vector<16x32xf32>
    %40 = arith.addf %34, %15 : vector<16x32xf32>
    %cst_31 = arith.constant 0.707106769 : f32
    %41 = vector.broadcast %cst_31 : f32 to vector<16x32xf32>
    %42 = arith.mulf %40, %41 : vector<16x32xf32>
    %c0_32 = arith.constant 0 : index
    %c0_33 = arith.constant 0 : index
    %43 = vector.load %arg12[%c0_32, %c0_33] : memref<16x32xf32, #tpu.memory_space<vmem>>, vector<16x32xf32>
    tpu.vector_store %arg12[%c0_32, %c0_33], %42 {strides = array<i32>} : memref<16x32xf32, #tpu.memory_space<vmem>>, vector<16x32xf32>,
    %44 = vector.shape_cast %39 : vector<16x32xf32> to vector<1x16x32xf32>
    %45 = vector.broadcast %44 : vector<1x16x32xf32> to vector<3x16x32xf32>
    %46 = arith.mulf %45, %8 : vector<3x16x32xf32>
    %c0_34 = arith.constant 0 : index
    %c0_35 = arith.constant 0 : index
    %c0_36 = arith.constant 0 : index
    %47 = vector.load %arg13[%c0_34, %c0_35, %c0_36] : memref<3x16x32xf32, #tpu.memory_space<vmem>>, vector<3x16x32xf32>
    tpu.vector_store %arg13[%c0_34, %c0_35, %c0_36], %46 {strides = array<i32>} : memref<3x16x32xf32, #tpu.memory_space<vmem>>, vector<3x16x32xf32>,
    return
  }
  func.func @transform_0(%arg0: i32) -> (i32, i32) {
    %c0_i32 = arith.constant 0 : i32
    %c0_i32_0 = arith.constant 0 : i32
    return %arg0, %c0_i32 : i32, i32
  }
  func.func @transform_1(%arg0: i32) -> (i32, i32, i32) {
    %c0_i32 = arith.constant 0 : i32
    %c0_i32_0 = arith.constant 0 : i32
    %c0_i32_1 = arith.constant 0 : i32
    return %c0_i32, %arg0, %c0_i32_0 : i32, i32, i32
  }
  func.func @transform_2(%arg0: i32) -> (i32, i32) {
    %c0_i32 = arith.constant 0 : i32
    %c0_i32_0 = arith.constant 0 : i32
    %c0_i32_1 = arith.constant 0 : i32
    return %c0_i32, %c0_i32_0 : i32, i32
  }
  func.func @transform_3(%arg0: i32) -> (i32, i32) {
    %c0_i32 = arith.constant 0 : i32
    %c0_i32_0 = arith.constant 0 : i32
    %c0_i32_1 = arith.constant 0 : i32
    return %c0_i32, %c0_i32_0 : i32, i32
  }
  func.func @transform_4(%arg0: i32) -> (i32, i32) {
    %c0_i32 = arith.constant 0 : i32
    %c0_i32_0 = arith.constant 0 : i32
    %c0_i32_1 = arith.constant 0 : i32
    return %c0_i32, %c0_i32_0 : i32, i32
  }
  func.func @transform_5(%arg0: i32) -> (i32, i32) {
    %c0_i32 = arith.constant 0 : i32
    %c0_i32_0 = arith.constant 0 : i32
    %c0_i32_1 = arith.constant 0 : i32
    return %c0_i32, %c0_i32_0 : i32, i32
  }
  func.func @transform_6(%arg0: i32) -> (i32, i32) {
    %c0_i32 = arith.constant 0 : i32
    %c0_i32_0 = arith.constant 0 : i32
    %c0_i32_1 = arith.constant 0 : i32
    return %c0_i32, %c0_i32_0 : i32, i32
  }
  func.func @transform_7(%arg0: i32) -> (i32, i32) {
    %c0_i32 = arith.constant 0 : i32
    %c0_i32_0 = arith.constant 0 : i32
    %c0_i32_1 = arith.constant 0 : i32
    return %c0_i32, %c0_i32_0 : i32, i32
  }
  func.func @transform_8(%arg0: i32) -> (i32, i32) {
    %c0_i32 = arith.constant 0 : i32
    %c0_i32_0 = arith.constant 0 : i32
    %c0_i32_1 = arith.constant 0 : i32
    return %c0_i32, %c0_i32_0 : i32, i32
  }
  func.func @transform_9(%arg0: i32) -> (i32, i32) {
    %c0_i32 = arith.constant 0 : i32
    %c0_i32_0 = arith.constant 0 : i32
    %c0_i32_1 = arith.constant 0 : i32
    return %c0_i32, %c0_i32_0 : i32, i32
  }
  func.func @transform_10(%arg0: i32) -> (i32, i32) {
    %c0_i32 = arith.constant 0 : i32
    %c0_i32_0 = arith.constant 0 : i32
    %c0_i32_1 = arith.constant 0 : i32
    return %c0_i32, %c0_i32_0 : i32, i32
  }
  func.func @transform_11(%arg0: i32) -> (i32, i32) {
    %c0_i32 = arith.constant 0 : i32
    %c0_i32_0 = arith.constant 0 : i32
    return %arg0, %c0_i32 : i32, i32
  }
  func.func @transform_12(%arg0: i32) -> (i32, i32, i32) {
    %c0_i32 = arith.constant 0 : i32
    %c0_i32_0 = arith.constant 0 : i32
    %c0_i32_1 = arith.constant 0 : i32
    return %c0_i32, %arg0, %c0_i32_0 : i32, i32, i32
  }
}

</mosaic_0001>

<llo_original>
// kernel: tpu_custom_call.1
$region0: #{tpu_custom_call.1}
  #allocation0 [shape = 'u32[]', space=smem, size = 0x4, offset = 0x4, fixed_abs, tag = 'smem constant byte address 0x4 - core index']
  #allocation1 [shape = 'u32[144,128]{1,0:T(1,128)}', space=vmem, size = 0x12000, scoped, tag = 'internal scratch']
  %s0 = inlined_call_operand.hbm [shape: f32[16,32], index: 0, kind: input, shape index: {}]
  %s1 = inlined_call_operand.hbm [shape: f32[3,16,32], index: 1, kind: input, shape index: {}]
  %s2 = inlined_call_operand.hbm [shape: f32[32,32], index: 2, kind: input, shape index: {}]
  %s3 = inlined_call_operand.hbm [shape: f32[32,32], index: 3, kind: input, shape index: {}]
  %s4 = inlined_call_operand.hbm [shape: f32[32,32], index: 4, kind: input, shape index: {}]
  %s5 = inlined_call_operand.hbm [shape: f32[32,32], index: 5, kind: input, shape index: {}]
  %s6 = inlined_call_operand.vmem [shape: f32[1,32], index: 6, kind: input, shape index: {}]
  %s7 = inlined_call_operand.hbm [shape: f32[32,32], index: 7, kind: input, shape index: {}]
  %s8 = inlined_call_operand.hbm [shape: f32[32,32], index: 8, kind: input, shape index: {}]
  %s9 = inlined_call_operand.vmem [shape: f32[1,32], index: 9, kind: input, shape index: {}]
  %s10 = inlined_call_operand.vmem [shape: f32[1,32], index: 10, kind: input, shape index: {}]
  %s11 = inlined_call_operand.hbm [shape: f32[16,32], index: 11, kind: output, shape index: {0}]
  %s12 = inlined_call_operand.hbm [shape: f32[3,16,32], index: 12, kind: output, shape index: {1}]
  %13 = xla_tuple %s11, %s12
  %s14 = sld [smem:[#allocation0]]
  $region94: #{tpu_custom_call.1} parent=0
    _
  %s16 = ssub.s32 1, %s14
  %s17 = scalar_select 0, %s16, %s14
  $region1: #{tpu_custom_call.1} parent=0
    #allocation2 [shape = 'u8[8192]{0}', space=vmem, size = 0x2000, scoped, tag = 'input window, operand 0, single buffered']
    #allocation3 [shape = 's32[1]{0}', space=sflag, size = 0x4, scoped, tag = 'scoped memory for tpu_custom_call.1']
    #allocation4 [shape = 's32[1]{0}', space=sflag, size = 0x4, scoped, tag = 'scoped memory for tpu_custom_call.1']
    #allocation5 [shape = 'u8[24576]{0}', space=vmem, size = 0x6000, scoped, tag = 'input window, operand 1, single buffered']
    #allocation6 [shape = 's32[1]{0}', space=sflag, size = 0x4, scoped, tag = 'scoped memory for tpu_custom_call.1']
    #allocation7 [shape = 'u8[16384]{0}', space=vmem, size = 0x4000, scoped, tag = 'input window, operand 2, single buffered']
    #allocation8 [shape = 'u8[16384]{0}', space=vmem, size = 0x4000, scoped, tag = 'input window, operand 3, single buffered']
    #allocation9 [shape = 's32[1]{0}', space=sflag, size = 0x4, scoped, tag = 'scoped memory for tpu_custom_call.1']
    #allocation10 [shape = 'u8[16384]{0}', space=vmem, size = 0x4000, scoped, tag = 'input window, operand 4, single buffered']
    #allocation11 [shape = 'u8[16384]{0}', space=vmem, size = 0x4000, scoped, tag = 'input window, operand 5, single buffered']
    #allocation12 [shape = 's32[1]{0}', space=sflag, size = 0x4, scoped, tag = 'scoped memory for tpu_custom_call.1']
    #allocation13 [shape = 'u8[16384]{0}', space=vmem, size = 0x4000, scoped, tag = 'input window, operand 7, single buffered']
    #allocation14 [shape = 'u8[16384]{0}', space=vmem, size = 0x4000, scoped, tag = 'input window, operand 8, single buffered']
    #allocation15 [shape = 's32[1]{0}', space=sflag, size = 0x4, scoped, tag = 'scoped memory for tpu_custom_call.1']
    #allocation16 [shape = 'u8[8192]{0}', space=vmem, size = 0x2000, scoped, tag = 'output window, operand 0, single buffered']
    #allocation17 [shape = 'u8[24576]{0}', space=vmem, size = 0x6000, scoped, tag = 'output window, operand 1, single buffered']
    #allocation18 [shape = 's32[1]{0}', space=sflag, size = 0x4, scoped, tag = 'scoped memory for tpu_custom_call.1']
    %18 = vsyncpa [#allocation3], 0
    %19 = vsyncpa [#allocation6], 0
    %20 = vsyncpa [#allocation9], 0
    %21 = vsyncpa [#allocation12], 0
    %22 = vsyncpa [#allocation15], 0
    %23 = vsyncpa [#allocation4], 0
    %24 = vsyncpa [#allocation18], 0
    // Predicated region
    $region2: #{tpu_custom_call.1} parent=1 // pred_check
      _
    $region3: #{tpu_custom_call.1} parent=1 // pred_check_branch
      %26 = sbr.rel (0) target = $region5
    $region4: #{tpu_custom_call.1} parent=1 // pred_region
      %s28 = ssub.s32 256, 256
      %29 = vsyncadd [#allocation3], %s28
      %s30 = sshll.u32 [#allocation2], 4
      %s31 = int_to_ptr.vmem [resolvable:$true] %s30
      %36 = dma.hbm_to_vmem [thread:$0]  %s0, 256, %s31, [#allocation3], 128, 128, 8
    $region5: #{tpu_custom_call.1} parent=1 // pred_fallthru
      _
    // Predicated region
    $region6: #{tpu_custom_call.1} parent=1 // pred_check
      _
    $region7: #{tpu_custom_call.1} parent=1 // pred_check_branch
      %38 = sbr.rel (0) target = $region9
    $region8: #{tpu_custom_call.1} parent=1 // pred_region
      %s40 = ssub.s32 768, 768
      %41 = vsyncadd [#allocation6], %s40
      %s42 = sshll.u32 [#allocation5], 4
      %s43 = int_to_ptr.vmem [resolvable:$true] %s42
      %48 = dma.hbm_to_vmem [thread:$0]  %s1, 768, %s43, [#allocation6], 128, 128, 8
    $region9: #{tpu_custom_call.1} parent=1 // pred_fallthru
      _
    // Predicated region
    $region10: #{tpu_custom_call.1} parent=1 // pred_check
      _
    $region11: #{tpu_custom_call.1} parent=1 // pred_check_branch
      %50 = sbr.rel (0) target = $region13
    $region12: #{tpu_custom_call.1} parent=1 // pred_region
      %s52 = ssub.s32 512, 512
      %53 = vsyncadd [#allocation6], %s52
      %s54 = sshll.u32 [#allocation7], 4
      %s55 = int_to_ptr.vmem [resolvable:$true] %s54
      %60 = dma.hbm_to_vmem [thread:$0]  %s2, 512, %s55, [#allocation6], 128, 128, 8
    $region13: #{tpu_custom_call.1} parent=1 // pred_fallthru
      _
    // Predicated region
    $region14: #{tpu_custom_call.1} parent=1 // pred_check
      _
    $region15: #{tpu_custom_call.1} parent=1 // pred_check_branch
      %62 = sbr.rel (0) target = $region17
    $region16: #{tpu_custom_call.1} parent=1 // pred_region
      %s64 = ssub.s32 512, 512
      %65 = vsyncadd [#allocation9], %s64
      %s66 = sshll.u32 [#allocation8], 4
      %s67 = int_to_ptr.vmem [resolvable:$true] %s66
      %72 = dma.hbm_to_vmem [thread:$0]  %s3, 512, %s67, [#allocation9], 128, 128, 8
    $region17: #{tpu_custom_call.1} parent=1 // pred_fallthru
      _
    // Predicated region
    $region18: #{tpu_custom_call.1} parent=1 // pred_check
      _
    $region19: #{tpu_custom_call.1} parent=1 // pred_check_branch
      %74 = sbr.rel (0) target = $region21
    $region20: #{tpu_custom_call.1} parent=1 // pred_region
      %s76 = ssub.s32 512, 512
      %77 = vsyncadd [#allocation9], %s76
      %s78 = sshll.u32 [#allocation10], 4
      %s79 = int_to_ptr.vmem [resolvable:$true] %s78
      %84 = dma.hbm_to_vmem [thread:$0]  %s4, 512, %s79, [#allocation9], 128, 128, 8
    $region21: #{tpu_custom_call.1} parent=1 // pred_fallthru
      _
    // Predicated region
    $region22: #{tpu_custom_call.1} parent=1 // pred_check
      _
    $region23: #{tpu_custom_call.1} parent=1 // pred_check_branch
      %86 = sbr.rel (0) target = $region25
    $region24: #{tpu_custom_call.1} parent=1 // pred_region
      %s88 = ssub.s32 512, 512
      %89 = vsyncadd [#allocation12], %s88
      %s90 = sshll.u32 [#allocation11], 4
      %s91 = int_to_ptr.vmem [resolvable:$true] %s90
      %96 = dma.hbm_to_vmem [thread:$0]  %s5, 512, %s91, [#allocation12], 128, 128, 8
    $region25: #{tpu_custom_call.1} parent=1 // pred_fallthru
      _
    // Predicated region
    $region26: #{tpu_custom_call.1} parent=1 // pred_check
      _
    $region27: #{tpu_custom_call.1} parent=1 // pred_check_branch
      %98 = sbr.rel (0) target = $region29
    $region28: #{tpu_custom_call.1} parent=1 // pred_region
      _
    $region29: #{tpu_custom_call.1} parent=1 // pred_fallthru
      _
    // Predicated region
    $region30: #{tpu_custom_call.1} parent=1 // pred_check
      _
    $region31: #{tpu_custom_call.1} parent=1 // pred_check_branch
      %100 = sbr.rel (0) target = $region33
    $region32: #{tpu_custom_call.1} parent=1 // pred_region
      %s102 = ssub.s32 512, 512
      %103 = vsyncadd [#allocation12], %s102
      %s104 = sshll.u32 [#allocation13], 4
      %s105 = int_to_ptr.vmem [resolvable:$true] %s104
      %110 = dma.hbm_to_vmem [thread:$0]  %s7, 512, %s105, [#allocation12], 128, 128, 8
    $region33: #{tpu_custom_call.1} parent=1 // pred_fallthru
      _
    // Predicated region
    $region34: #{tpu_custom_call.1} parent=1 // pred_check
      _
    $region35: #{tpu_custom_call.1} parent=1 // pred_check_branch
      %112 = sbr.rel (0) target = $region37
    $region36: #{tpu_custom_call.1} parent=1 // pred_region
      %s114 = ssub.s32 512, 512
      %115 = vsyncadd [#allocation15], %s114
      %s116 = sshll.u32 [#allocation14], 4
      %s117 = int_to_ptr.vmem [resolvable:$true] %s116
      %122 = dma.hbm_to_vmem [thread:$0]  %s8, 512, %s117, [#allocation15], 128, 128, 8
    $region37: #{tpu_custom_call.1} parent=1 // pred_fallthru
      _
    // Predicated region
    $region38: #{tpu_custom_call.1} parent=1 // pred_check
      _
    $region39: #{tpu_custom_call.1} parent=1 // pred_check_branch
      %124 = sbr.rel (0) target = $region41
    $region40: #{tpu_custom_call.1} parent=1 // pred_region
      _
    $region41: #{tpu_custom_call.1} parent=1 // pred_fallthru
      _
    // Predicated region
    $region42: #{tpu_custom_call.1} parent=1 // pred_check
      _
    $region43: #{tpu_custom_call.1} parent=1 // pred_check_branch
      %126 = sbr.rel (0) target = $region45
    $region44: #{tpu_custom_call.1} parent=1 // pred_region
      _
    $region45: #{tpu_custom_call.1} parent=1 // pred_fallthru
      _
    // Predicated region
    $region46: #{tpu_custom_call.1} parent=1 // pred_check
      _
    $region47: #{tpu_custom_call.1} parent=1 // pred_check_branch
      %128 = sbr.rel (0) target = $region49
    $region48: #{tpu_custom_call.1} parent=1 // pred_region
      %129 = dma.done [#allocation3], 256
    $region49: #{tpu_custom_call.1} parent=1 // pred_fallthru
      _
    // Predicated region
    $region50: #{tpu_custom_call.1} parent=1 // pred_check
      _
    $region51: #{tpu_custom_call.1} parent=1 // pred_check_branch
      %131 = sbr.rel (0) target = $region53
    $region52: #{tpu_custom_call.1} parent=1 // pred_region
      %132 = dma.done [#allocation6], 768
    $region53: #{tpu_custom_call.1} parent=1 // pred_fallthru
      _
    // Predicated region
    $region54: #{tpu_custom_call.1} parent=1 // pred_check
      _
    $region55: #{tpu_custom_call.1} parent=1 // pred_check_branch
      %134 = sbr.rel (0) target = $region57
    $region56: #{tpu_custom_call.1} parent=1 // pred_region
      %135 = dma.done [#allocation6], 512
    $region57: #{tpu_custom_call.1} parent=1 // pred_fallthru
      _
    // Predicated region
    $region58: #{tpu_custom_call.1} parent=1 // pred_check
      _
    $region59: #{tpu_custom_call.1} parent=1 // pred_check_branch
      %137 = sbr.rel (0) target = $region61
    $region60: #{tpu_custom_call.1} parent=1 // pred_region
      %138 = dma.done [#allocation9], 512
    $region61: #{tpu_custom_call.1} parent=1 // pred_fallthru
      _
    // Predicated region
    $region62: #{tpu_custom_call.1} parent=1 // pred_check
      _
    $region63: #{tpu_custom_call.1} parent=1 // pred_check_branch
      %140 = sbr.rel (0) target = $region65
    $region64: #{tpu_custom_call.1} parent=1 // pred_region
      %141 = dma.done [#allocation9], 512
    $region65: #{tpu_custom_call.1} parent=1 // pred_fallthru
      _
    // Predicated region
    $region66: #{tpu_custom_call.1} parent=1 // pred_check
      _
    $region67: #{tpu_custom_call.1} parent=1 // pred_check_branch
      %143 = sbr.rel (0) target = $region69
    $region68: #{tpu_custom_call.1} parent=1 // pred_region
      %144 = dma.done [#allocation12], 512
    $region69: #{tpu_custom_call.1} parent=1 // pred_fallthru
      _
    // Predicated region
    $region70: #{tpu_custom_call.1} parent=1 // pred_check
      _
    $region71: #{tpu_custom_call.1} parent=1 // pred_check_branch
      %146 = sbr.rel (0) target = $region73
    $region72: #{tpu_custom_call.1} parent=1 // pred_region
      %147 = dma.done [#allocation12], 512
    $region73: #{tpu_custom_call.1} parent=1 // pred_fallthru
      _
    // Predicated region
    $region74: #{tpu_custom_call.1} parent=1 // pred_check
      _
    $region75: #{tpu_custom_call.1} parent=1 // pred_check_branch
      %149 = sbr.rel (0) target = $region77
    $region76: #{tpu_custom_call.1} parent=1 // pred_region
      %150 = dma.done [#allocation15], 512
    $region77: #{tpu_custom_call.1} parent=1 // pred_fallthru
      _
    %v151 = vld [vmem:[#allocation2] sm:$0xff]
    %v152 = vld [vmem:[#allocation2 + $0x8] sm:$0xff]
    %v153 = vld [vmem:[#allocation5] sm:$0xff]
    %v154 = vld [vmem:[#allocation5 + $0x8] sm:$0xff]
    %v155 = vld [vmem:[#allocation5 + $0x10] sm:$0xff]
    %v156 = vld [vmem:[#allocation5 + $0x18] sm:$0xff]
    %v157 = vld [vmem:[#allocation5 + $0x20] sm:$0xff]
    %v158 = vld [vmem:[#allocation5 + $0x28] sm:$0xff]
    %v159 = vld [vmem:[#allocation7] sm:$0xff]
    %v160 = vld [vmem:[#allocation7 + $0x8] sm:$0xff]
    %v161 = vld [vmem:[#allocation7 + $0x10] sm:$0xff]
    %v162 = vld [vmem:[#allocation7 + $0x18] sm:$0xff]
    %vm163 = vcmask 261120
    %v165 = vsel %vm163, %v153, 0
    %v168 = vsel %vm163, %v154, 0
    %v171 = vsel %vm163, %v155, 0
    %v174 = vsel %vm163, %v156, 0
    %v177 = vsel %vm163, %v157, 0
    %v180 = vsel %vm163, %v158, 0
    %182 = vmatprep.subr.mxu0 0.0
    %183 = vmatpush1.msra.mxu0 %v159
    %184 = vmatprep.subr.mxu0 0.0
    %185 = vmatpush1.msra.mxu0 %v160
    %186 = vmatprep.subr.mxu0 0.0
    %187 = vmatpush1.msra.mxu0 %v161
    %188 = vmatprep.subr.mxu0 0.0
    %189 = vmatpush1.msra.mxu0 %v162
    %190 = vmatprep.subr.mxu0 0.0
    %191 = vmatpush1.msra.mxu0 0.0
    %192 = vmatprep.subr.mxu0 0.0
    %193 = vmatpush1.msra.mxu0 0.0
    %194 = vmatprep.subr.mxu0 0.0
    %195 = vmatpush1.msra.mxu0 0.0
    %196 = vmatprep.subr.mxu0 0.0
    %197 = vmatpush1.msra.mxu0 0.0
    %198 = vmatprep.subr.mxu0 0.0
    %199 = vmatpush1.msra.mxu0 0.0
    %200 = vmatprep.subr.mxu0 0.0
    %201 = vmatpush1.msra.mxu0 0.0
    %202 = vmatprep.subr.mxu0 0.0
    %203 = vmatpush1.msra.mxu0 0.0
    %204 = vmatprep.subr.mxu0 0.0
    %205 = vmatpush1.msra.mxu0 0.0
    %206 = vmatprep.subr.mxu0 0.0
    %207 = vmatpush1.msra.mxu0 0.0
    %208 = vmatprep.subr.mxu0 0.0
    %209 = vmatpush1.msra.mxu0 0.0
    %210 = vmatprep.subr.mxu0 0.0
    %211 = vmatpush1.msra.mxu0 0.0
    %212 = vmatprep.subr.mxu0 0.0
    %213 = vmatpush1.msra.mxu0 0.0
    %214 = vmatprep.subr.mxu0 0.0
    %215 = vmatpush1.msra.mxu0 0.0
    %216 = vmatprep.subr.mxu0 0.0
    %217 = vmatpush1.msra.mxu0 0.0
    %218 = vmatprep.subr.mxu0 0.0
    %219 = vmatpush1.msra.mxu0 0.0
    %220 = vmatprep.subr.mxu0 0.0
    %221 = vmatpush1.msra.mxu0 0.0
    %222 = vmatprep.subr.mxu0 0.0
    %223 = vmatpush1.msra.mxu0 0.0
    %224 = vmatprep.subr.mxu0 0.0
    %225 = vmatpush1.msra.mxu0 0.0
    %226 = vmatprep.subr.mxu0 0.0
    %227 = vmatpush1.msra.mxu0 0.0
    %228 = vmatprep.subr.mxu0 0.0
    %229 = vmatpush1.msra.mxu0 0.0
    %230 = vmatprep.subr.mxu0 0.0
    %231 = vmatpush1.msra.mxu0 0.0
    %232 = vmatprep.subr.mxu0 0.0
    %233 = vmatpush1.msra.mxu0 0.0
    %234 = vmatprep.subr.mxu0 0.0
    %235 = vmatpush1.msra.mxu0 0.0
    %236 = vmatprep.subr.mxu0 0.0
    %237 = vmatpush1.msra.mxu0 0.0
    %238 = vmatprep.subr.mxu0 0.0
    %239 = vmatpush1.msra.mxu0 0.0
    %240 = vmatprep.subr.mxu0 0.0
    %241 = vmatpush1.msra.mxu0 0.0
    %242 = vmatprep.subr.mxu0 0.0
    %243 = vmatpush1.msra.mxu0 0.0
    %244 = vmatprep.subr.mxu0 0.0
    %245 = vmatpush1.msra.mxu0 0.0
    %246 = vmatprep.mubr.f32.mxu0 0.0
    %247 = vmatmul.mubr.f32.gmra.mrb[0].mxu0 %v165
    %v248 = vpop.f32.mrb[0].mxu0
    %v249 = vadd.f32 0.0, %v248
    %v250 = vpop.f32.mrb[0].mxu0
    %251 = vmatprep.mubr.f32.mxu0 0.0
    %252 = vmatmul.mubr.f32.gmra.mrb[0].mxu0 %v168
    %v253 = vpop.f32.mrb[0].mxu0
    %v254 = vadd.f32 0.0, %v253
    %v255 = vpop.f32.mrb[0].mxu0
    %256 = vmatprep.mubr.f32.mxu0 0.0
    %257 = vmatmul.mubr.f32.gmra.mrb[0].mxu0 %v171
    %v258 = vpop.f32.mrb[0].mxu0
    %v259 = vadd.f32 0.0, %v258
    %v260 = vpop.f32.mrb[0].mxu0
    %261 = vmatprep.mubr.f32.mxu0 0.0
    %262 = vmatmul.mubr.f32.gmra.mrb[0].mxu0 %v174
    %v263 = vpop.f32.mrb[0].mxu0
    %v264 = vadd.f32 0.0, %v263
    %v265 = vpop.f32.mrb[0].mxu0
    %266 = vmatprep.mubr.f32.mxu0 0.0
    %267 = vmatmul.mubr.f32.gmra.mrb[0].mxu0 %v177
    %v268 = vpop.f32.mrb[0].mxu0
    %v269 = vadd.f32 0.0, %v268
    %v270 = vpop.f32.mrb[0].mxu0
    %271 = vmatprep.mubr.f32.mxu0 0.0
    %272 = vmatmul.mubr.f32.gmra.mrb[0].mxu0 %v180
    %v273 = vpop.f32.mrb[0].mxu0
    %v274 = vadd.f32 0.0, %v273
    %v275 = vpop.f32.mrb[0].mxu0
    %276 = vdwg.mxu0
    %v277 = vld [vmem:[#allocation8] sm:$0xff]
    %v278 = vld [vmem:[#allocation8 + $0x8] sm:$0xff]
    %v279 = vld [vmem:[#allocation8 + $0x10] sm:$0xff]
    %v280 = vld [vmem:[#allocation8 + $0x18] sm:$0xff]
    %281 = vmatprep.subr.mxu0 0.0
    %282 = vmatpush1.msra.mxu0 %v277
    %283 = vmatprep.subr.mxu0 0.0
    %284 = vmatpush1.msra.mxu0 %v278
    %285 = vmatprep.subr.mxu0 0.0
    %286 = vmatpush1.msra.mxu0 %v279
    %287 = vmatprep.subr.mxu0 0.0
    %288 = vmatpush1.msra.mxu0 %v280
    %289 = vmatprep.subr.mxu0 0.0
    %290 = vmatpush1.msra.mxu0 0.0
    %291 = vmatprep.subr.mxu0 0.0
    %292 = vmatpush1.msra.mxu0 0.0
    %293 = vmatprep.subr.mxu0 0.0
    %294 = vmatpush1.msra.mxu0 0.0
    %295 = vmatprep.subr.mxu0 0.0
    %296 = vmatpush1.msra.mxu0 0.0
    %297 = vmatprep.subr.mxu0 0.0
    %298 = vmatpush1.msra.mxu0 0.0
    %299 = vmatprep.subr.mxu0 0.0
    %300 = vmatpush1.msra.mxu0 0.0
    %301 = vmatprep.subr.mxu0 0.0
    %302 = vmatpush1.msra.mxu0 0.0
    %303 = vmatprep.subr.mxu0 0.0
    %304 = vmatpush1.msra.mxu0 0.0
    %305 = vmatprep.subr.mxu0 0.0
    %306 = vmatpush1.msra.mxu0 0.0
    %307 = vmatprep.subr.mxu0 0.0
    %308 = vmatpush1.msra.mxu0 0.0
    %309 = vmatprep.subr.mxu0 0.0
    %310 = vmatpush1.msra.mxu0 0.0
    %311 = vmatprep.subr.mxu0 0.0
    %312 = vmatpush1.msra.mxu0 0.0
    %313 = vmatprep.subr.mxu0 0.0
    %314 = vmatpush1.msra.mxu0 0.0
    %315 = vmatprep.subr.mxu0 0.0
    %316 = vmatpush1.msra.mxu0 0.0
    %317 = vmatprep.subr.mxu0 0.0
    %318 = vmatpush1.msra.mxu0 0.0
    %319 = vmatprep.subr.mxu0 0.0
    %320 = vmatpush1.msra.mxu0 0.0
    %321 = vmatprep.subr.mxu0 0.0
    %322 = vmatpush1.msra.mxu0 0.0
    %323 = vmatprep.subr.mxu0 0.0
    %324 = vmatpush1.msra.mxu0 0.0
    %325 = vmatprep.subr.mxu0 0.0
    %326 = vmatpush1.msra.mxu0 0.0
    %327 = vmatprep.subr.mxu0 0.0
    %328 = vmatpush1.msra.mxu0 0.0
    %329 = vmatprep.subr.mxu0 0.0
    %330 = vmatpush1.msra.mxu0 0.0
    %331 = vmatprep.subr.mxu0 0.0
    %332 = vmatpush1.msra.mxu0 0.0
    %333 = vmatprep.subr.mxu0 0.0
    %334 = vmatpush1.msra.mxu0 0.0
    %335 = vmatprep.subr.mxu0 0.0
    %336 = vmatpush1.msra.mxu0 0.0
    %337 = vmatprep.subr.mxu0 0.0
    %338 = vmatpush1.msra.mxu0 0.0
    %339 = vmatprep.subr.mxu0 0.0
    %340 = vmatpush1.msra.mxu0 0.0
    %341 = vmatprep.subr.mxu0 0.0
    %342 = vmatpush1.msra.mxu0 0.0
    %343 = vmatprep.subr.mxu0 0.0
    %344 = vmatpush1.msra.mxu0 0.0
    %345 = vmatprep.mubr.f32.mxu0 0.0
    %346 = vmatmul.mubr.f32.gmra.mrb[0].mxu0 %v165
    %v347 = vpop.f32.mrb[0].mxu0
    %v348 = vadd.f32 0.0, %v347
    %v349 = vpop.f32.mrb[0].mxu0
    %350 = vmatprep.mubr.f32.mxu0 0.0
    %351 = vmatmul.mubr.f32.gmra.mrb[0].mxu0 %v168
    %v352 = vpop.f32.mrb[0].mxu0
    %v353 = vadd.f32 0.0, %v352
    %v354 = vpop.f32.mrb[0].mxu0
    %355 = vmatprep.mubr.f32.mxu0 0.0
    %356 = vmatmul.mubr.f32.gmra.mrb[0].mxu0 %v171
    %v357 = vpop.f32.mrb[0].mxu0
    %v358 = vadd.f32 0.0, %v357
    %v359 = vpop.f32.mrb[0].mxu0
    %360 = vmatprep.mubr.f32.mxu0 0.0
    %361 = vmatmul.mubr.f32.gmra.mrb[0].mxu0 %v174
    %v362 = vpop.f32.mrb[0].mxu0
    %v363 = vadd.f32 0.0, %v362
    %v364 = vpop.f32.mrb[0].mxu0
    %365 = vmatprep.mubr.f32.mxu0 0.0
    %366 = vmatmul.mubr.f32.gmra.mrb[0].mxu0 %v177
    %v367 = vpop.f32.mrb[0].mxu0
    %v368 = vadd.f32 0.0, %v367
    %v369 = vpop.f32.mrb[0].mxu0
    %370 = vmatprep.mubr.f32.mxu0 0.0
    %371 = vmatmul.mubr.f32.gmra.mrb[0].mxu0 %v180
    %v372 = vpop.f32.mrb[0].mxu0
    %v373 = vadd.f32 0.0, %v372
    %v374 = vpop.f32.mrb[0].mxu0
    %375 = vdwg.mxu0
    %v376 = vmul.f32 %v249, %v249
    %v377 = vmul.f32 %v254, %v254
    %v378 = vmul.f32 %v259, %v259
    %v379 = vmul.f32 %v264, %v264
    %v380 = vmul.f32 %v269, %v269
    %v381 = vmul.f32 %v274, %v274
    %v382 = vsel %vm163, %v376, 0.0
    %v383 = vsel %vm163, %v378, 0.0
    %v384 = vadd.f32 %v382, %v383
    %v385 = vsel %vm163, %v380, 0.0
    %v386 = vadd.f32 %v384, %v385
    %v387 = vsel %vm163, %v377, 0.0
    %v388 = vsel %vm163, %v379, 0.0
    %v389 = vadd.f32 %v387, %v388
    %v390 = vsel %vm163, %v381, 0.0
    %v391 = vadd.f32 %v389, %v390
    %v392 = vrsqrt.pop %v386
    %v393 = vmul.f32 %v386, %v392
    %vm394 = vcmp.eq.f32.partialorder %v386, inf
    %v395 = vsel %vm394, %v386, %v393
    %vm396 = vcmp.eq.f32.partialorder %v386, 0.0
    %v397 = vand.u32 %v386, 2147483648
    %v398 = vsel %vm396, %v397, %v395
    %v399 = vrsqrt.pop %v391
    %v400 = vmul.f32 %v391, %v399
    %vm401 = vcmp.eq.f32.partialorder %v391, inf
    %v402 = vsel %vm401, %v391, %v400
    %vm403 = vcmp.eq.f32.partialorder %v391, 0.0
    %v404 = vand.u32 %v391, 2147483648
    %v405 = vsel %vm403, %v404, %v402
    %v406 = vmul.f32 %v249, %v348
    %v407 = vmul.f32 %v254, %v353
    %v408 = vmul.f32 %v259, %v358
    %v409 = vmul.f32 %v264, %v363
    %v410 = vmul.f32 %v269, %v368
    %v411 = vmul.f32 %v274, %v373
    %v412 = vsel %vm163, %v406, 0.0
    %v413 = vsel %vm163, %v408, 0.0
    %v414 = vadd.f32 %v412, %v413
    %v415 = vsel %vm163, %v410, 0.0
    %v416 = vadd.f32 %v414, %v415
    %v417 = vsel %vm163, %v407, 0.0
    %v418 = vsel %vm163, %v409, 0.0
    %v419 = vadd.f32 %v417, %v418
    %v420 = vsel %vm163, %v411, 0.0
    %v421 = vadd.f32 %v419, %v420
    %v422 = vmul.f32 %v416, 0.17677669
    %v423 = vmul.f32 %v421, 0.17677669
    %v424 = vld [vmem:[#allocation10] sm:$0xff]
    %v425 = vld [vmem:[#allocation10 + $0x8] sm:$0xff]
    %v426 = vld [vmem:[#allocation10 + $0x10] sm:$0xff]
    %v427 = vld [vmem:[#allocation10 + $0x18] sm:$0xff]
    %v428 = vld [vmem:[#allocation11] sm:$0xff]
    %v429 = vld [vmem:[#allocation11 + $0x8] sm:$0xff]
    %v430 = vld [vmem:[#allocation11 + $0x10] sm:$0xff]
    %v431 = vld [vmem:[#allocation11 + $0x18] sm:$0xff]
    %v433 = vsel %vm163, %v398, 0
    %v436 = vsel %vm163, %v405, 0
    %438 = vmatprep.subr.mxu0 0.0
    %439 = vmatpush1.msra.mxu0 %v428
    %440 = vmatprep.subr.mxu0 0.0
    %441 = vmatpush1.msra.mxu0 %v429
    %442 = vmatprep.subr.mxu0 0.0
    %443 = vmatpush1.msra.mxu0 %v430
    %444 = vmatprep.subr.mxu0 0.0
    %445 = vmatpush1.msra.mxu0 %v431
    %446 = vmatprep.subr.mxu0 0.0
    %447 = vmatpush1.msra.mxu0 0.0
    %448 = vmatprep.subr.mxu0 0.0
    %449 = vmatpush1.msra.mxu0 0.0
    %450 = vmatprep.subr.mxu0 0.0
    %451 = vmatpush1.msra.mxu0 0.0
    %452 = vmatprep.subr.mxu0 0.0
    %453 = vmatpush1.msra.mxu0 0.0
    %454 = vmatprep.subr.mxu0 0.0
    %455 = vmatpush1.msra.mxu0 0.0
    %456 = vmatprep.subr.mxu0 0.0
    %457 = vmatpush1.msra.mxu0 0.0
    %458 = vmatprep.subr.mxu0 0.0
    %459 = vmatpush1.msra.mxu0 0.0
    %460 = vmatprep.subr.mxu0 0.0
    %461 = vmatpush1.msra.mxu0 0.0
    %462 = vmatprep.subr.mxu0 0.0
    %463 = vmatpush1.msra.mxu0 0.0
    %464 = vmatprep.subr.mxu0 0.0
    %465 = vmatpush1.msra.mxu0 0.0
    %466 = vmatprep.subr.mxu0 0.0
    %467 = vmatpush1.msra.mxu0 0.0
    %468 = vmatprep.subr.mxu0 0.0
    %469 = vmatpush1.msra.mxu0 0.0
    %470 = vmatprep.subr.mxu0 0.0
    %471 = vmatpush1.msra.mxu0 0.0
    %472 = vmatprep.subr.mxu0 0.0
    %473 = vmatpush1.msra.mxu0 0.0
    %474 = vmatprep.subr.mxu0 0.0
    %475 = vmatpush1.msra.mxu0 0.0
    %476 = vmatprep.subr.mxu0 0.0
    %477 = vmatpush1.msra.mxu0 0.0
    %478 = vmatprep.subr.mxu0 0.0
    %479 = vmatpush1.msra.mxu0 0.0
    %480 = vmatprep.subr.mxu0 0.0
    %481 = vmatpush1.msra.mxu0 0.0
    %482 = vmatprep.subr.mxu0 0.0
    %483 = vmatpush1.msra.mxu0 0.0
    %484 = vmatprep.subr.mxu0 0.0
    %485 = vmatpush1.msra.mxu0 0.0
    %486 = vmatprep.subr.mxu0 0.0
    %487 = vmatpush1.msra.mxu0 0.0
    %488 = vmatprep.subr.mxu0 0.0
    %489 = vmatpush1.msra.mxu0 0.0
    %490 = vmatprep.subr.mxu0 0.0
    %491 = vmatpush1.msra.mxu0 0.0
    %492 = vmatprep.subr.mxu0 0.0
    %493 = vmatpush1.msra.mxu0 0.0
    %494 = vmatprep.subr.mxu0 0.0
    %495 = vmatpush1.msra.mxu0 0.0
    %496 = vmatprep.subr.mxu0 0.0
    %497 = vmatpush1.msra.mxu0 0.0
    %498 = vmatprep.subr.mxu0 0.0
    %499 = vmatpush1.msra.mxu0 0.0
    %500 = vmatprep.subr.mxu0 0.0
    %501 = vmatpush1.msra.mxu0 0.0
    %502 = vmatprep.mubr.f32.mxu0 0.0
    %503 = vmatmul.mubr.f32.gmra.mrb[0].mxu0 %v433
    %v504 = vpop.f32.mrb[0].mxu0
    %v505 = vadd.f32 0.0, %v504
    %v506 = vpop.f32.mrb[0].mxu0
    %507 = vmatprep.mubr.f32.mxu0 0.0
    %508 = vmatmul.mubr.f32.gmra.mrb[0].mxu0 %v436
    %v509 = vpop.f32.mrb[0].mxu0
    %v510 = vadd.f32 0.0, %v509
    %v511 = vpop.f32.mrb[0].mxu0
    %512 = vdwg.mxu0
    %v514 = vsel %vm163, %v151, 0
    %v517 = vsel %vm163, %v152, 0
    %519 = vmatprep.subr.mxu0 0.0
    %520 = vmatpush1.msra.mxu0 %v424
    %521 = vmatprep.subr.mxu0 0.0
    %522 = vmatpush1.msra.mxu0 %v425
    %523 = vmatprep.subr.mxu0 0.0
    %524 = vmatpush1.msra.mxu0 %v426
    %525 = vmatprep.subr.mxu0 0.0
    %526 = vmatpush1.msra.mxu0 %v427
    %527 = vmatprep.subr.mxu0 0.0
    %528 = vmatpush1.msra.mxu0 0.0
    %529 = vmatprep.subr.mxu0 0.0
    %530 = vmatpush1.msra.mxu0 0.0
    %531 = vmatprep.subr.mxu0 0.0
    %532 = vmatpush1.msra.mxu0 0.0
    %533 = vmatprep.subr.mxu0 0.0
    %534 = vmatpush1.msra.mxu0 0.0
    %535 = vmatprep.subr.mxu0 0.0
    %536 = vmatpush1.msra.mxu0 0.0
    %537 = vmatprep.subr.mxu0 0.0
    %538 = vmatpush1.msra.mxu0 0.0
    %539 = vmatprep.subr.mxu0 0.0
    %540 = vmatpush1.msra.mxu0 0.0
    %541 = vmatprep.subr.mxu0 0.0
    %542 = vmatpush1.msra.mxu0 0.0
    %543 = vmatprep.subr.mxu0 0.0
    %544 = vmatpush1.msra.mxu0 0.0
    %545 = vmatprep.subr.mxu0 0.0
    %546 = vmatpush1.msra.mxu0 0.0
    %547 = vmatprep.subr.mxu0 0.0
    %548 = vmatpush1.msra.mxu0 0.0
    %549 = vmatprep.subr.mxu0 0.0
    %550 = vmatpush1.msra.mxu0 0.0
    %551 = vmatprep.subr.mxu0 0.0
    %552 = vmatpush1.msra.mxu0 0.0
    %553 = vmatprep.subr.mxu0 0.0
    %554 = vmatpush1.msra.mxu0 0.0
    %555 = vmatprep.subr.mxu0 0.0
    %556 = vmatpush1.msra.mxu0 0.0
    %557 = vmatprep.subr.mxu0 0.0
    %558 = vmatpush1.msra.mxu0 0.0
    %559 = vmatprep.subr.mxu0 0.0
    %560 = vmatpush1.msra.mxu0 0.0
    %561 = vmatprep.subr.mxu0 0.0
    %562 = vmatpush1.msra.mxu0 0.0
    %563 = vmatprep.subr.mxu0 0.0
    %564 = vmatpush1.msra.mxu0 0.0
    %565 = vmatprep.subr.mxu0 0.0
    %566 = vmatpush1.msra.mxu0 0.0
    %567 = vmatprep.subr.mxu0 0.0
    %568 = vmatpush1.msra.mxu0 0.0
    %569 = vmatprep.subr.mxu0 0.0
    %570 = vmatpush1.msra.mxu0 0.0
    %571 = vmatprep.subr.mxu0 0.0
    %572 = vmatpush1.msra.mxu0 0.0
    %573 = vmatprep.subr.mxu0 0.0
    %574 = vmatpush1.msra.mxu0 0.0
    %575 = vmatprep.subr.mxu0 0.0
    %576 = vmatpush1.msra.mxu0 0.0
    %577 = vmatprep.subr.mxu0 0.0
    %578 = vmatpush1.msra.mxu0 0.0
    %579 = vmatprep.subr.mxu0 0.0
    %580 = vmatpush1.msra.mxu0 0.0
    %581 = vmatprep.subr.mxu0 0.0
    %582 = vmatpush1.msra.mxu0 0.0
    %583 = vmatprep.mubr.f32.mxu0 0.0
    %584 = vmatmul.mubr.f32.gmra.mrb[0].mxu0 %v514
    %v585 = vpop.f32.mrb[0].mxu0
    %v586 = vadd.f32 %v505, %v585
    %v587 = vpop.f32.mrb[0].mxu0
    %588 = vmatprep.mubr.f32.mxu0 0.0
    %589 = vmatmul.mubr.f32.gmra.mrb[0].mxu0 %v517
    %v590 = vpop.f32.mrb[0].mxu0
    %v591 = vadd.f32 %v510, %v590
    %v592 = vpop.f32.mrb[0].mxu0
    %593 = vdwg.mxu0
    %v594 = vld [vmem:[%s6] sm:$0x1]
    %v596 = vlaneseq
    %v597 = vshrl.u32 %v596, 7
    %v598 = vsub.s32 0, %v597
    %v599 = vrot.slane %v594, %v598
    %v601 = vadd.f32 %v586, %v599
    %v602 = vadd.f32 %v591, %v599
    %v603 = vxor.u32 %v601, 2147483648
    %v604 = vxor.u32 %v602, 2147483648
    %v605 = vmul.f32 %v603, 1.442695
    %v606 = vpow.pop %v605
    %v607 = vmul.f32 %v604, 1.442695
    %v608 = vpow.pop %v607
    %v609 = vadd.f32 %v606, 1.0
    %v610 = vadd.f32 %v608, 1.0
    %v611 = vrcp.pop %v609
    %v612 = vmul.f32 1.0, %v611
    %v613 = vrcp.pop %v610
    %v614 = vmul.f32 1.0, %v613
    %v615 = vmul.f32 %v601, %v612
    %v616 = vmul.f32 %v602, %v614
    %v617 = vld [vmem:[#allocation13] sm:$0xff]
    %v618 = vld [vmem:[#allocation13 + $0x8] sm:$0xff]
    %v619 = vld [vmem:[#allocation13 + $0x10] sm:$0xff]
    %v620 = vld [vmem:[#allocation13 + $0x18] sm:$0xff]
    %v621 = vld [vmem:[%s9] sm:$0x1]
    %v623 = vlaneseq
    %v624 = vshrl.u32 %v623, 7
    %v625 = vsub.s32 0, %v624
    %v626 = vrot.slane %v621, %v625
    %v629 = vsel %vm163, %v615, 0
    %v632 = vsel %vm163, %v616, 0
    %634 = vmatprep.subr.mxu0 0.0
    %635 = vmatpush1.msra.mxu0 %v617
    %636 = vmatprep.subr.mxu0 0.0
    %637 = vmatpush1.msra.mxu0 %v618
    %638 = vmatprep.subr.mxu0 0.0
    %639 = vmatpush1.msra.mxu0 %v619
    %640 = vmatprep.subr.mxu0 0.0
    %641 = vmatpush1.msra.mxu0 %v620
    %642 = vmatprep.subr.mxu0 0.0
    %643 = vmatpush1.msra.mxu0 0.0
    %644 = vmatprep.subr.mxu0 0.0
    %645 = vmatpush1.msra.mxu0 0.0
    %646 = vmatprep.subr.mxu0 0.0
    %647 = vmatpush1.msra.mxu0 0.0
    %648 = vmatprep.subr.mxu0 0.0
    %649 = vmatpush1.msra.mxu0 0.0
    %650 = vmatprep.subr.mxu0 0.0
    %651 = vmatpush1.msra.mxu0 0.0
    %652 = vmatprep.subr.mxu0 0.0
    %653 = vmatpush1.msra.mxu0 0.0
    %654 = vmatprep.subr.mxu0 0.0
    %655 = vmatpush1.msra.mxu0 0.0
    %656 = vmatprep.subr.mxu0 0.0
    %657 = vmatpush1.msra.mxu0 0.0
    %658 = vmatprep.subr.mxu0 0.0
    %659 = vmatpush1.msra.mxu0 0.0
    %660 = vmatprep.subr.mxu0 0.0
    %661 = vmatpush1.msra.mxu0 0.0
    %662 = vmatprep.subr.mxu0 0.0
    %663 = vmatpush1.msra.mxu0 0.0
    %664 = vmatprep.subr.mxu0 0.0
    %665 = vmatpush1.msra.mxu0 0.0
    %666 = vmatprep.subr.mxu0 0.0
    %667 = vmatpush1.msra.mxu0 0.0
    %668 = vmatprep.subr.mxu0 0.0
    %669 = vmatpush1.msra.mxu0 0.0
    %670 = vmatprep.subr.mxu0 0.0
    %671 = vmatpush1.msra.mxu0 0.0
    %672 = vmatprep.subr.mxu0 0.0
    %673 = vmatpush1.msra.mxu0 0.0
    %674 = vmatprep.subr.mxu0 0.0
    %675 = vmatpush1.msra.mxu0 0.0
    %676 = vmatprep.subr.mxu0 0.0
    %677 = vmatpush1.msra.mxu0 0.0
    %678 = vmatprep.subr.mxu0 0.0
    %679 = vmatpush1.msra.mxu0 0.0
    %680 = vmatprep.subr.mxu0 0.0
    %681 = vmatpush1.msra.mxu0 0.0
    %682 = vmatprep.subr.mxu0 0.0
    %683 = vmatpush1.msra.mxu0 0.0
    %684 = vmatprep.subr.mxu0 0.0
    %685 = vmatpush1.msra.mxu0 0.0
    %686 = vmatprep.subr.mxu0 0.0
    %687 = vmatpush1.msra.mxu0 0.0
    %688 = vmatprep.subr.mxu0 0.0
    %689 = vmatpush1.msra.mxu0 0.0
    %690 = vmatprep.subr.mxu0 0.0
    %691 = vmatpush1.msra.mxu0 0.0
    %692 = vmatprep.subr.mxu0 0.0
    %693 = vmatpush1.msra.mxu0 0.0
    %694 = vmatprep.subr.mxu0 0.0
    %695 = vmatpush1.msra.mxu0 0.0
    %696 = vmatprep.subr.mxu0 0.0
    %697 = vmatpush1.msra.mxu0 0.0
    %698 = vmatprep.mubr.f32.mxu0 0.0
    %699 = vmatmul.mubr.f32.gmra.mrb[0].mxu0 %v629
    %v700 = vpop.f32.mrb[0].mxu0
    %v701 = vadd.f32 %v626, %v700
    %v702 = vpop.f32.mrb[0].mxu0
    %703 = vmatprep.mubr.f32.mxu0 0.0
    %704 = vmatmul.mubr.f32.gmra.mrb[0].mxu0 %v632
    %v705 = vpop.f32.mrb[0].mxu0
    %v706 = vadd.f32 %v626, %v705
    %v707 = vpop.f32.mrb[0].mxu0
    %708 = vdwg.mxu0
    %v709 = vld [vmem:[#allocation14] sm:$0xff]
    %v710 = vld [vmem:[#allocation14 + $0x8] sm:$0xff]
    %v711 = vld [vmem:[#allocation14 + $0x10] sm:$0xff]
    %v712 = vld [vmem:[#allocation14 + $0x18] sm:$0xff]
    %v713 = vld [vmem:[%s10] sm:$0x1]
    %v715 = vlaneseq
    %v716 = vshrl.u32 %v715, 7
    %v717 = vsub.s32 0, %v716
    %v718 = vrot.slane %v713, %v717
    %720 = vmatprep.subr.mxu0 0.0
    %721 = vmatpush1.msra.mxu0 %v709
    %722 = vmatprep.subr.mxu0 0.0
    %723 = vmatpush1.msra.mxu0 %v710
    %724 = vmatprep.subr.mxu0 0.0
    %725 = vmatpush1.msra.mxu0 %v711
    %726 = vmatprep.subr.mxu0 0.0
    %727 = vmatpush1.msra.mxu0 %v712
    %728 = vmatprep.subr.mxu0 0.0
    %729 = vmatpush1.msra.mxu0 0.0
    %730 = vmatprep.subr.mxu0 0.0
    %731 = vmatpush1.msra.mxu0 0.0
    %732 = vmatprep.subr.mxu0 0.0
    %733 = vmatpush1.msra.mxu0 0.0
    %734 = vmatprep.subr.mxu0 0.0
    %735 = vmatpush1.msra.mxu0 0.0
    %736 = vmatprep.subr.mxu0 0.0
    %737 = vmatpush1.msra.mxu0 0.0
    %738 = vmatprep.subr.mxu0 0.0
    %739 = vmatpush1.msra.mxu0 0.0
    %740 = vmatprep.subr.mxu0 0.0
    %741 = vmatpush1.msra.mxu0 0.0
    %742 = vmatprep.subr.mxu0 0.0
    %743 = vmatpush1.msra.mxu0 0.0
    %744 = vmatprep.subr.mxu0 0.0
    %745 = vmatpush1.msra.mxu0 0.0
    %746 = vmatprep.subr.mxu0 0.0
    %747 = vmatpush1.msra.mxu0 0.0
    %748 = vmatprep.subr.mxu0 0.0
    %749 = vmatpush1.msra.mxu0 0.0
    %750 = vmatprep.subr.mxu0 0.0
    %751 = vmatpush1.msra.mxu0 0.0
    %752 = vmatprep.subr.mxu0 0.0
    %753 = vmatpush1.msra.mxu0 0.0
    %754 = vmatprep.subr.mxu0 0.0
    %755 = vmatpush1.msra.mxu0 0.0
    %756 = vmatprep.subr.mxu0 0.0
    %757 = vmatpush1.msra.mxu0 0.0
    %758 = vmatprep.subr.mxu0 0.0
    %759 = vmatpush1.msra.mxu0 0.0
    %760 = vmatprep.subr.mxu0 0.0
    %761 = vmatpush1.msra.mxu0 0.0
    %762 = vmatprep.subr.mxu0 0.0
    %763 = vmatpush1.msra.mxu0 0.0
    %764 = vmatprep.subr.mxu0 0.0
    %765 = vmatpush1.msra.mxu0 0.0
    %766 = vmatprep.subr.mxu0 0.0
    %767 = vmatpush1.msra.mxu0 0.0
    %768 = vmatprep.subr.mxu0 0.0
    %769 = vmatpush1.msra.mxu0 0.0
    %770 = vmatprep.subr.mxu0 0.0
    %771 = vmatpush1.msra.mxu0 0.0
    %772 = vmatprep.subr.mxu0 0.0
    %773 = vmatpush1.msra.mxu0 0.0
    %774 = vmatprep.subr.mxu0 0.0
    %775 = vmatpush1.msra.mxu0 0.0
    %776 = vmatprep.subr.mxu0 0.0
    %777 = vmatpush1.msra.mxu0 0.0
    %778 = vmatprep.subr.mxu0 0.0
    %779 = vmatpush1.msra.mxu0 0.0
    %780 = vmatprep.subr.mxu0 0.0
    %781 = vmatpush1.msra.mxu0 0.0
    %782 = vmatprep.subr.mxu0 0.0
    %783 = vmatpush1.msra.mxu0 0.0
    %784 = vmatprep.mubr.f32.mxu0 0.0
    %785 = vmatmul.mubr.f32.gmra.mrb[0].mxu0 %v629
    %v786 = vpop.f32.mrb[0].mxu0
    %v787 = vadd.f32 %v718, %v786
    %v788 = vpop.f32.mrb[0].mxu0
    %789 = vmatprep.mubr.f32.mxu0 0.0
    %790 = vmatmul.mubr.f32.gmra.mrb[0].mxu0 %v632
    %v791 = vpop.f32.mrb[0].mxu0
    %v792 = vadd.f32 %v718, %v791
    %v793 = vpop.f32.mrb[0].mxu0
    %794 = vdwg.mxu0
    %v795 = vadd.f32 %v701, %v422
    %v796 = vadd.f32 %v706, %v423
    %v797 = vmul.f32 %v795, 0.70710677
    %v798 = vmul.f32 %v796, 0.70710677
    %799 = vst.msk [vmem:[#allocation16] sm:$0xff] %vm163, %v797
    %800 = vst.msk [vmem:[#allocation16 + $0x8] sm:$0xff] %vm163, %v798
    %v801 = vmul.f32 %v787, %v348
    %v802 = vmul.f32 %v792, %v353
    %v803 = vmul.f32 %v787, %v358
    %v804 = vmul.f32 %v792, %v363
    %v805 = vmul.f32 %v787, %v368
    %v806 = vmul.f32 %v792, %v373
    %807 = vst.msk [vmem:[#allocation17] sm:$0xff] %vm163, %v801
    %808 = vst.msk [vmem:[#allocation17 + $0x8] sm:$0xff] %vm163, %v802
    %809 = vst.msk [vmem:[#allocation17 + $0x10] sm:$0xff] %vm163, %v803
    %810 = vst.msk [vmem:[#allocation17 + $0x18] sm:$0xff] %vm163, %v804
    %811 = vst.msk [vmem:[#allocation17 + $0x20] sm:$0xff] %vm163, %v805
    %812 = vst.msk [vmem:[#allocation17 + $0x28] sm:$0xff] %vm163, %v806
    // Predicated region
    $region78: #{tpu_custom_call.1} parent=1 // pred_check
      _
    $region79: #{tpu_custom_call.1} parent=1 // pred_check_branch
      %814 = sbr.rel (0) target = $region81
    $region80: #{tpu_custom_call.1} parent=1 // pred_region
      %s816 = ssub.s32 256, 256
      %817 = vsyncadd [#allocation4], %s816
      %s818 = sshll.u32 [#allocation16], 4
      %s819 = int_to_ptr.vmem [resolvable:$true] %s818
      %824 = dma.vmem_to_hbm [thread:$0]  %s819, 256, %s11, [#allocation4], 128, 128, 8
    $region81: #{tpu_custom_call.1} parent=1 // pred_fallthru
      _
    // Predicated region
    $region82: #{tpu_custom_call.1} parent=1 // pred_check
      _
    $region83: #{tpu_custom_call.1} parent=1 // pred_check_branch
      %826 = sbr.rel (0) target = $region85
    $region84: #{tpu_custom_call.1} parent=1 // pred_region
      %s828 = ssub.s32 768, 768
      %829 = vsyncadd [#allocation18], %s828
      %s830 = sshll.u32 [#allocation17], 4
      %s831 = int_to_ptr.vmem [resolvable:$true] %s830
      %836 = dma.vmem_to_hbm [thread:$0]  %s831, 768, %s12, [#allocation18], 128, 128, 8
    $region85: #{tpu_custom_call.1} parent=1 // pred_fallthru
      _
    // Predicated region
    $region86: #{tpu_custom_call.1} parent=1 // pred_check
      _
    $region87: #{tpu_custom_call.1} parent=1 // pred_check_branch
      %838 = sbr.rel (0) target = $region89
    $region88: #{tpu_custom_call.1} parent=1 // pred_region
      %839 = dma.done [#allocation4], 256
    $region89: #{tpu_custom_call.1} parent=1 // pred_fallthru
      _
    // Predicated region
    $region90: #{tpu_custom_call.1} parent=1 // pred_check
      _
    $region91: #{tpu_custom_call.1} parent=1 // pred_check_branch
      %841 = sbr.rel (0) target = $region93
    $region92: #{tpu_custom_call.1} parent=1 // pred_region
      %842 = dma.done [#allocation18], 768
    $region93: #{tpu_custom_call.1} parent=1 // pred_fallthru
      _
    %843 = vsyncpa [#allocation3], 1
    %844 = vsyncpa [#allocation6], 1
    %845 = vsyncpa [#allocation9], 1
    %846 = vsyncpa [#allocation12], 1
    %847 = vsyncpa [#allocation15], 1
    %848 = vsyncpa [#allocation4], 1
    %849 = vsyncpa [#allocation18], 1

</llo_original>
